<compile_context>
chip_gen: v7x
topology: tpu7x:2x2x1
jax: 0.10.0
libtpu: 0.0.40
codegen_flags: <defaults>
</compile_context>

<pallas_src>
import functools

import numpy as np
import jax
import jax.numpy as jnp
from jax.experimental import pallas as pl
from jax.experimental.pallas import tpu as pltpu


def _fused_kernel(xs_ref, mb2_ref, mbf_ref, wf_ref, b2_ref, bf_ref, o_ref, *, wp):
    """Fused conv1x1 -> conv1x1 -> 3x3 avg-pool -> hard-swish on packed frames.

    xs_ref : (C, N, L) f32 VMEM. Frame (c, n) = channel-c plane of image n,
             zero-padded by 3 per spatial side, flattened row-major onto the
             lane axis and zero-padded from Hp*Wp up to L (multiple of 128).
    mb2_ref: (1, L) f32 VMEM. 1.0 on the conv_2 zero-pad ring (ring dist == 1).
    mbf_ref: (1, L) f32 VMEM. 1.0 on the conv_1 ring + interior (ring dist >= 2).
    wf_ref : (C, C) f32 SMEM, fused weights w2 @ w1.
    b2_ref : (C,)  f32 SMEM, conv_2 bias.
    bf_ref : (C,)  f32 SMEM, fused bias w2 @ b1 + b2.
    o_ref  : (C, N, L) f32 VMEM, pooled + hard-swish result on the padded
             frame (the valid (H+4)x(W+4) window is cropped by the wrapper).
    """
    C, _, L = xs_ref.shape

    # Hoist the input channel planes: each plane is read exactly once.
    planes = [xs_ref[k] for k in range(C)]
    mb2 = mb2_ref[...]
    mbf = mbf_ref[...]

    inv9 = 1.0 / 9.0
    inv6 = 1.0 / 6.0

    for c in range(C):
        # Fused 1x1 channel mix (pure VPU; zero pad rings mix to zero).
        y = wf_ref[c, 0] * planes[0]
        for k in range(1, C):
            y = y + wf_ref[c, k] * planes[k]
        # Constant background of the zero-padded conv_2 output:
        #   d==0 (pool pad) -> 0, d==1 -> b2, d>=2 -> bf.
        y = y + (b2_ref[c] * mb2 + bf_ref[c] * mbf)

        # Separable 3x3 sum: both directions are lane rotations of the
        # row-major-flattened frame.  Wrapped-in values only land in the
        # all-zero d==0 ring / lane tail, which the wrapper crops away.
        sw = y + pltpu.roll(y, 1, axis=1) + pltpu.roll(y, L - 1, axis=1)
        sh = sw + pltpu.roll(sw, wp, axis=1) + pltpu.roll(sw, L - wp, axis=1)
        v3 = sh * inv9

        # Hard-swish epilogue: v3 * clamp(v3 + 3, 0, 6) / 6.
        o_ref[c] = v3 * jnp.clip(v3 + 3.0, 0.0, 6.0) * inv6


@jax.jit
def model_forward(x, w1, b1, w2, b2):
    N, C, H, W = x.shape
    Hp, Wp = H + 6, W + 6          # conv_1 pad + conv_2 pad + pool pad
    F = Hp * Wp
    L = ((F + 127) // 128) * 128   # lane-dense frame length (multiple of 128)

    # Fuse the two 1x1 convolutions (exact f32, no MXU dot for a 3x3).
    wf = jnp.sum(w2[:, :, None] * w1[None, :, :], axis=1)   # w2 @ w1
    bf = jnp.sum(w2 * b1[None, :], axis=1) + b2             # w2 @ b1 + b2

    # Pack: zero-pad each frame by 3/side and flatten spatial onto lanes.
    xp = jnp.pad(x, ((0, 0), (0, 0), (3, 3), (3, 3)))            # (N,C,Hp,Wp)
    xs = jnp.transpose(xp, (1, 0, 2, 3)).reshape(C, N, F)
    xs = jnp.pad(xs, ((0, 0), (0, 0), (0, L - F)))               # (C,N,L)

    # Ring-distance masks of the padded frame (trace-time constants).
    rr, cc = np.meshgrid(np.arange(Hp), np.arange(Wp), indexing="ij")
    d = np.minimum(np.minimum(rr, Hp - 1 - rr), np.minimum(cc, Wp - 1 - cc))
    mb2 = np.zeros((1, L), np.float32)
    mbf = np.zeros((1, L), np.float32)
    mb2[0, :F] = (d == 1).reshape(-1)
    mbf[0, :F] = (d >= 2).reshape(-1)

    vmem = pl.BlockSpec(memory_space=pltpu.MemorySpace.VMEM)
    smem = pl.BlockSpec(memory_space=pltpu.MemorySpace.SMEM)
    out = pl.pallas_call(
        functools.partial(_fused_kernel, wp=Wp),
        out_shape=jax.ShapeDtypeStruct((C, N, L), jnp.float32),
        in_specs=[vmem, vmem, vmem, smem, smem, smem],
        out_specs=vmem,
    )(xs, jnp.asarray(mb2), jnp.asarray(mbf), wf, b2, bf)

    # Unpack and crop the valid (H+4)x(W+4) window of each frame.
    out = out[:, :, :F].reshape(C, N, Hp, Wp)
    out = jnp.transpose(out, (1, 0, 2, 3))                        # (N,C,Hp,Wp)
    return out[:, :, 1:Hp - 1, 1:Wp - 1]


def reference_forward(x, w1, b1, w2, b2):
    """Pure-JAX reference of the original (unfused) module."""
    def conv1x1_pad1(inp, w, b):
        # Conv2d(k=1, padding=1): pad input by 1, channel mix, add bias.
        inp = jnp.pad(inp, ((0, 0), (0, 0), (1, 1), (1, 1)))
        c_out, c_in = w.shape
        outs = []
        for c in range(c_out):
            acc = w[c, 0] * inp[:, 0]
            for k in range(1, c_in):
                acc = acc + w[c, k] * inp[:, k]
            outs.append(acc + b[c])
        return jnp.stack(outs, axis=1)

    y1 = conv1x1_pad1(x, w1, b1)
    y2 = conv1x1_pad1(y1, w2, b2)
    y2p = jnp.pad(y2, ((0, 0), (0, 0), (1, 1), (1, 1)))
    ho, wo = y2.shape[2], y2.shape[3]
    acc = jnp.zeros_like(y2)
    for di in range(3):
        for dj in range(3):
            acc = acc + y2p[:, :, di:di + ho, dj:dj + wo]
    v3 = acc / 9.0
    return v3 * jnp.clip(v3 + 3.0, 0.0, 6.0) / 6.0


if __name__ == "__main__":
    key = jax.random.PRNGKey(0)
    kx, kw1, kb1, kw2, kb2 = jax.random.split(key, 5)

    N, C, H, W = 2, 3, 16, 16
    x = jax.random.normal(kx, (N, C, H, W), dtype=jnp.float32)

    # Deterministic synthetic Conv2d(3,3,1) params (weights squeezed to (C,C)).
    bound = 1.0 / (C ** 0.5)
    w1 = jax.random.uniform(kw1, (C, C), jnp.float32, -bound, bound)
    b1 = jax.random.uniform(kb1, (C,), jnp.float32, -bound, bound)
    w2 = jax.random.uniform(kw2, (C, C), jnp.float32, -bound, bound)
    b2 = jax.random.uniform(kb2, (C,), jnp.float32, -bound, bound)

    out = jax.block_until_ready(model_forward(x, w1, b1, w2, b2))
    ref = reference_forward(x, w1, b1, w2, b2)

    assert out.shape == (N, C, H + 4, W + 4)
    assert jnp.allclose(out, ref, atol=1e-4, rtol=1e-4), "mismatch vs reference"

    print("KERNEL_OK")
</pallas_src>

<mosaic_0001>
module attributes {stable_mosaic.version = 11 : i64} {
  func.func @_fused_kernel(%arg0: memref<3x2x512xf32, #tpu.memory_space<vmem>>, %arg1: memref<1x512xf32, #tpu.memory_space<vmem>>, %arg2: memref<1x512xf32, #tpu.memory_space<vmem>>, %arg3: memref<3x3xf32, #tpu.memory_space<smem>>, %arg4: memref<3xf32, #tpu.memory_space<smem>>, %arg5: memref<3xf32, #tpu.memory_space<smem>>, %arg6: memref<3x2x512xf32, #tpu.memory_space<vmem>>) attributes {dimension_semantics = [], scalar_prefetch = 0 : i64, scratch_operands = 0 : i64, tpu.core_type = #tpu.core_type<tc>} {
    %c0 = arith.constant 0 : index
    %c0_0 = arith.constant 0 : index
    %c0_1 = arith.constant 0 : index
    %0 = vector.load %arg0[%c0, %c0_0, %c0_1] : memref<3x2x512xf32, #tpu.memory_space<vmem>>, vector<1x2x512xf32>
    %1 = vector.shape_cast %0 : vector<1x2x512xf32> to vector<2x512xf32>
    %c1 = arith.constant 1 : index
    %c0_2 = arith.constant 0 : index
    %c0_3 = arith.constant 0 : index
    %2 = vector.load %arg0[%c1, %c0_2, %c0_3] : memref<3x2x512xf32, #tpu.memory_space<vmem>>, vector<1x2x512xf32>
    %3 = vector.shape_cast %2 : vector<1x2x512xf32> to vector<2x512xf32>
    %c2 = arith.constant 2 : index
    %c0_4 = arith.constant 0 : index
    %c0_5 = arith.constant 0 : index
    %4 = vector.load %arg0[%c2, %c0_4, %c0_5] : memref<3x2x512xf32, #tpu.memory_space<vmem>>, vector<1x2x512xf32>
    %5 = vector.shape_cast %4 : vector<1x2x512xf32> to vector<2x512xf32>
    %c0_6 = arith.constant 0 : index
    %c0_7 = arith.constant 0 : index
    %6 = vector.load %arg1[%c0_6, %c0_7] : memref<1x512xf32, #tpu.memory_space<vmem>>, vector<1x512xf32>
    %c0_8 = arith.constant 0 : index
    %c0_9 = arith.constant 0 : index
    %7 = vector.load %arg2[%c0_8, %c0_9] : memref<1x512xf32, #tpu.memory_space<vmem>>, vector<1x512xf32>
    %c0_10 = arith.constant 0 : index
    %c0_11 = arith.constant 0 : index
    %8 = memref.load %arg3[%c0_10, %c0_11] : memref<3x3xf32, #tpu.memory_space<smem>>
    %9 = vector.broadcast %8 : f32 to vector<2x512xf32>
    %10 = arith.mulf %9, %1 : vector<2x512xf32>
    %c0_12 = arith.constant 0 : index
    %c1_13 = arith.constant 1 : index
    %11 = memref.load %arg3[%c0_12, %c1_13] : memref<3x3xf32, #tpu.memory_space<smem>>
    %12 = vector.broadcast %11 : f32 to vector<2x512xf32>
    %13 = arith.mulf %12, %3 : vector<2x512xf32>
    %14 = arith.addf %10, %13 : vector<2x512xf32>
    %c0_14 = arith.constant 0 : index
    %c2_15 = arith.constant 2 : index
    %15 = memref.load %arg3[%c0_14, %c2_15] : memref<3x3xf32, #tpu.memory_space<smem>>
    %16 = vector.broadcast %15 : f32 to vector<2x512xf32>
    %17 = arith.mulf %16, %5 : vector<2x512xf32>
    %18 = arith.addf %14, %17 : vector<2x512xf32>
    %c0_16 = arith.constant 0 : index
    %19 = memref.load %arg4[%c0_16] : memref<3xf32, #tpu.memory_space<smem>>
    %20 = vector.broadcast %19 : f32 to vector<1x512xf32>
    %21 = arith.mulf %20, %6 : vector<1x512xf32>
    %c0_17 = arith.constant 0 : index
    %22 = memref.load %arg5[%c0_17] : memref<3xf32, #tpu.memory_space<smem>>
    %23 = vector.broadcast %22 : f32 to vector<1x512xf32>
    %24 = arith.mulf %23, %7 : vector<1x512xf32>
    %25 = arith.addf %21, %24 : vector<1x512xf32>
    %26 = vector.broadcast %25 : vector<1x512xf32> to vector<2x512xf32>
    %27 = arith.addf %18, %26 : vector<2x512xf32>
    %c1_i32 = arith.constant 1 : i32
    %28 = tpu.dynamic_rotate %27 by %c1_i32 dim 1 : vector<2x512xf32>, i32 -> vector<2x512xf32>
    %29 = arith.addf %27, %28 : vector<2x512xf32>
    %c511_i32 = arith.constant 511 : i32
    %30 = tpu.dynamic_rotate %27 by %c511_i32 dim 1 : vector<2x512xf32>, i32 -> vector<2x512xf32>
    %31 = arith.addf %29, %30 : vector<2x512xf32>
    %c22_i32 = arith.constant 22 : i32
    %32 = tpu.dynamic_rotate %31 by %c22_i32 dim 1 : vector<2x512xf32>, i32 -> vector<2x512xf32>
    %33 = arith.addf %31, %32 : vector<2x512xf32>
    %c490_i32 = arith.constant 490 : i32
    %34 = tpu.dynamic_rotate %31 by %c490_i32 dim 1 : vector<2x512xf32>, i32 -> vector<2x512xf32>
    %35 = arith.addf %33, %34 : vector<2x512xf32>
    %cst = arith.constant 0.111111112 : f32
    %36 = vector.broadcast %cst : f32 to vector<2x512xf32>
    %37 = arith.mulf %35, %36 : vector<2x512xf32>
    %cst_18 = arith.constant 3.000000e+00 : f32
    %38 = vector.broadcast %cst_18 : f32 to vector<2x512xf32>
    %39 = arith.addf %37, %38 : vector<2x512xf32>
    %cst_19 = arith.constant 0.000000e+00 : f32
    %cst_20 = arith.constant 6.000000e+00 : f32
    %40 = vector.broadcast %cst_19 : f32 to vector<2x512xf32>
    %41 = arith.maximumf %40, %39 : vector<2x512xf32>
    %42 = vector.broadcast %cst_20 : f32 to vector<2x512xf32>
    %43 = arith.minimumf %42, %41 : vector<2x512xf32>
    %44 = arith.mulf %37, %43 : vector<2x512xf32>
    %cst_21 = arith.constant 0.166666672 : f32
    %45 = vector.broadcast %cst_21 : f32 to vector<2x512xf32>
    %46 = arith.mulf %44, %45 : vector<2x512xf32>
    %c0_22 = arith.constant 0 : index
    %c0_23 = arith.constant 0 : index
    %c0_24 = arith.constant 0 : index
    %47 = vector.load %arg6[%c0_22, %c0_23, %c0_24] : memref<3x2x512xf32, #tpu.memory_space<vmem>>, vector<1x2x512xf32>
    %48 = vector.shape_cast %47 : vector<1x2x512xf32> to vector<2x512xf32>
    %49 = vector.shape_cast %46 : vector<2x512xf32> to vector<1x2x512xf32>
    tpu.vector_store %arg6[%c0_22, %c0_23, %c0_24], %49 {strides = array<i32>} : memref<3x2x512xf32, #tpu.memory_space<vmem>>, vector<1x2x512xf32>,
    %c1_25 = arith.constant 1 : index
    %c0_26 = arith.constant 0 : index
    %50 = memref.load %arg3[%c1_25, %c0_26] : memref<3x3xf32, #tpu.memory_space<smem>>
    %51 = vector.broadcast %50 : f32 to vector<2x512xf32>
    %52 = arith.mulf %51, %1 : vector<2x512xf32>
    %c1_27 = arith.constant 1 : index
    %c1_28 = arith.constant 1 : index
    %53 = memref.load %arg3[%c1_27, %c1_28] : memref<3x3xf32, #tpu.memory_space<smem>>
    %54 = vector.broadcast %53 : f32 to vector<2x512xf32>
    %55 = arith.mulf %54, %3 : vector<2x512xf32>
    %56 = arith.addf %52, %55 : vector<2x512xf32>
    %c1_29 = arith.constant 1 : index
    %c2_30 = arith.constant 2 : index
    %57 = memref.load %arg3[%c1_29, %c2_30] : memref<3x3xf32, #tpu.memory_space<smem>>
    %58 = vector.broadcast %57 : f32 to vector<2x512xf32>
    %59 = arith.mulf %58, %5 : vector<2x512xf32>
    %60 = arith.addf %56, %59 : vector<2x512xf32>
    %c1_31 = arith.constant 1 : index
    %61 = memref.load %arg4[%c1_31] : memref<3xf32, #tpu.memory_space<smem>>
    %62 = vector.broadcast %61 : f32 to vector<1x512xf32>
    %63 = arith.mulf %62, %6 : vector<1x512xf32>
    %c1_32 = arith.constant 1 : index
    %64 = memref.load %arg5[%c1_32] : memref<3xf32, #tpu.memory_space<smem>>
    %65 = vector.broadcast %64 : f32 to vector<1x512xf32>
    %66 = arith.mulf %65, %7 : vector<1x512xf32>
    %67 = arith.addf %63, %66 : vector<1x512xf32>
    %68 = vector.broadcast %67 : vector<1x512xf32> to vector<2x512xf32>
    %69 = arith.addf %60, %68 : vector<2x512xf32>
    %c1_i32_33 = arith.constant 1 : i32
    %70 = tpu.dynamic_rotate %69 by %c1_i32_33 dim 1 : vector<2x512xf32>, i32 -> vector<2x512xf32>
    %71 = arith.addf %69, %70 : vector<2x512xf32>
    %c511_i32_34 = arith.constant 511 : i32
    %72 = tpu.dynamic_rotate %69 by %c511_i32_34 dim 1 : vector<2x512xf32>, i32 -> vector<2x512xf32>
    %73 = arith.addf %71, %72 : vector<2x512xf32>
    %c22_i32_35 = arith.constant 22 : i32
    %74 = tpu.dynamic_rotate %73 by %c22_i32_35 dim 1 : vector<2x512xf32>, i32 -> vector<2x512xf32>
    %75 = arith.addf %73, %74 : vector<2x512xf32>
    %c490_i32_36 = arith.constant 490 : i32
    %76 = tpu.dynamic_rotate %73 by %c490_i32_36 dim 1 : vector<2x512xf32>, i32 -> vector<2x512xf32>
    %77 = arith.addf %75, %76 : vector<2x512xf32>
    %cst_37 = arith.constant 0.111111112 : f32
    %78 = vector.broadcast %cst_37 : f32 to vector<2x512xf32>
    %79 = arith.mulf %77, %78 : vector<2x512xf32>
    %cst_38 = arith.constant 3.000000e+00 : f32
    %80 = vector.broadcast %cst_38 : f32 to vector<2x512xf32>
    %81 = arith.addf %79, %80 : vector<2x512xf32>
    %cst_39 = arith.constant 0.000000e+00 : f32
    %cst_40 = arith.constant 6.000000e+00 : f32
    %82 = vector.broadcast %cst_39 : f32 to vector<2x512xf32>
    %83 = arith.maximumf %82, %81 : vector<2x512xf32>
    %84 = vector.broadcast %cst_40 : f32 to vector<2x512xf32>
    %85 = arith.minimumf %84, %83 : vector<2x512xf32>
    %86 = arith.mulf %79, %85 : vector<2x512xf32>
    %cst_41 = arith.constant 0.166666672 : f32
    %87 = vector.broadcast %cst_41 : f32 to vector<2x512xf32>
    %88 = arith.mulf %86, %87 : vector<2x512xf32>
    %c1_42 = arith.constant 1 : index
    %c0_43 = arith.constant 0 : index
    %c0_44 = arith.constant 0 : index
    %89 = vector.load %arg6[%c1_42, %c0_43, %c0_44] : memref<3x2x512xf32, #tpu.memory_space<vmem>>, vector<1x2x512xf32>
    %90 = vector.shape_cast %89 : vector<1x2x512xf32> to vector<2x512xf32>
    %91 = vector.shape_cast %88 : vector<2x512xf32> to vector<1x2x512xf32>
    tpu.vector_store %arg6[%c1_42, %c0_43, %c0_44], %91 {strides = array<i32>} : memref<3x2x512xf32, #tpu.memory_space<vmem>>, vector<1x2x512xf32>,
    %c2_45 = arith.constant 2 : index
    %c0_46 = arith.constant 0 : index
    %92 = memref.load %arg3[%c2_45, %c0_46] : memref<3x3xf32, #tpu.memory_space<smem>>
    %93 = vector.broadcast %92 : f32 to vector<2x512xf32>
    %94 = arith.mulf %93, %1 : vector<2x512xf32>
    %c2_47 = arith.constant 2 : index
    %c1_48 = arith.constant 1 : index
    %95 = memref.load %arg3[%c2_47, %c1_48] : memref<3x3xf32, #tpu.memory_space<smem>>
    %96 = vector.broadcast %95 : f32 to vector<2x512xf32>
    %97 = arith.mulf %96, %3 : vector<2x512xf32>
    %98 = arith.addf %94, %97 : vector<2x512xf32>
    %c2_49 = arith.constant 2 : index
    %c2_50 = arith.constant 2 : index
    %99 = memref.load %arg3[%c2_49, %c2_50] : memref<3x3xf32, #tpu.memory_space<smem>>
    %100 = vector.broadcast %99 : f32 to vector<2x512xf32>
    %101 = arith.mulf %100, %5 : vector<2x512xf32>
    %102 = arith.addf %98, %101 : vector<2x512xf32>
    %c2_51 = arith.constant 2 : index
    %103 = memref.load %arg4[%c2_51] : memref<3xf32, #tpu.memory_space<smem>>
    %104 = vector.broadcast %103 : f32 to vector<1x512xf32>
    %105 = arith.mulf %104, %6 : vector<1x512xf32>
    %c2_52 = arith.constant 2 : index
    %106 = memref.load %arg5[%c2_52] : memref<3xf32, #tpu.memory_space<smem>>
    %107 = vector.broadcast %106 : f32 to vector<1x512xf32>
    %108 = arith.mulf %107, %7 : vector<1x512xf32>
    %109 = arith.addf %105, %108 : vector<1x512xf32>
    %110 = vector.broadcast %109 : vector<1x512xf32> to vector<2x512xf32>
    %111 = arith.addf %102, %110 : vector<2x512xf32>
    %c1_i32_53 = arith.constant 1 : i32
    %112 = tpu.dynamic_rotate %111 by %c1_i32_53 dim 1 : vector<2x512xf32>, i32 -> vector<2x512xf32>
    %113 = arith.addf %111, %112 : vector<2x512xf32>
    %c511_i32_54 = arith.constant 511 : i32
    %114 = tpu.dynamic_rotate %111 by %c511_i32_54 dim 1 : vector<2x512xf32>, i32 -> vector<2x512xf32>
    %115 = arith.addf %113, %114 : vector<2x512xf32>
    %c22_i32_55 = arith.constant 22 : i32
    %116 = tpu.dynamic_rotate %115 by %c22_i32_55 dim 1 : vector<2x512xf32>, i32 -> vector<2x512xf32>
    %117 = arith.addf %115, %116 : vector<2x512xf32>
    %c490_i32_56 = arith.constant 490 : i32
    %118 = tpu.dynamic_rotate %115 by %c490_i32_56 dim 1 : vector<2x512xf32>, i32 -> vector<2x512xf32>
    %119 = arith.addf %117, %118 : vector<2x512xf32>
    %cst_57 = arith.constant 0.111111112 : f32
    %120 = vector.broadcast %cst_57 : f32 to vector<2x512xf32>
    %121 = arith.mulf %119, %120 : vector<2x512xf32>
    %cst_58 = arith.constant 3.000000e+00 : f32
    %122 = vector.broadcast %cst_58 : f32 to vector<2x512xf32>
    %123 = arith.addf %121, %122 : vector<2x512xf32>
    %cst_59 = arith.constant 0.000000e+00 : f32
    %cst_60 = arith.constant 6.000000e+00 : f32
    %124 = vector.broadcast %cst_59 : f32 to vector<2x512xf32>
    %125 = arith.maximumf %124, %123 : vector<2x512xf32>
    %126 = vector.broadcast %cst_60 : f32 to vector<2x512xf32>
    %127 = arith.minimumf %126, %125 : vector<2x512xf32>
    %128 = arith.mulf %121, %127 : vector<2x512xf32>
    %cst_61 = arith.constant 0.166666672 : f32
    %129 = vector.broadcast %cst_61 : f32 to vector<2x512xf32>
    %130 = arith.mulf %128, %129 : vector<2x512xf32>
    %c2_62 = arith.constant 2 : index
    %c0_63 = arith.constant 0 : index
    %c0_64 = arith.constant 0 : index
    %131 = vector.load %arg6[%c2_62, %c0_63, %c0_64] : memref<3x2x512xf32, #tpu.memory_space<vmem>>, vector<1x2x512xf32>
    %132 = vector.shape_cast %131 : vector<1x2x512xf32> to vector<2x512xf32>
    %133 = vector.shape_cast %130 : vector<2x512xf32> to vector<1x2x512xf32>
    tpu.vector_store %arg6[%c2_62, %c0_63, %c0_64], %133 {strides = array<i32>} : memref<3x2x512xf32, #tpu.memory_space<vmem>>, vector<1x2x512xf32>,
    return
  }
}

</mosaic_0001>

<llo_original>
// kernel: model_forward.1
$region0: #{model_forward.1}
  #allocation0 [shape = 'u32[]', space=smem, size = 0x4, offset = 0x4, fixed_abs, tag = 'smem constant byte address 0x4 - core index']
  #allocation1 [shape = 'u32[144,128]{1,0:T(1,128)}', space=vmem, size = 0x12000, scoped, tag = 'internal scratch']
  %s0 = inlined_call_operand.vmem [shape: f32[3,2,512], index: 0, kind: input, shape index: {}]
  %s1 = inlined_call_operand.vmem [shape: f32[1,512], index: 1, kind: input, shape index: {}]
  %s2 = inlined_call_operand.vmem [shape: f32[1,512], index: 2, kind: input, shape index: {}]
  %s3 = inlined_call_operand.vmem [shape: f32[3,3], index: 3, kind: input, shape index: {}]
  %s4 = inlined_call_operand.vmem [shape: f32[3], index: 4, kind: input, shape index: {}]
  %s5 = inlined_call_operand.vmem [shape: f32[3], index: 5, kind: input, shape index: {}]
  %s6 = inlined_call_operand.vmem [shape: f32[3,2,512], index: 6, kind: output, shape index: {}]
  %s7 = sld [smem:[#allocation0]]
  $region46: #{model_forward.1} parent=0
    _
  %s9 = ssub.s32 1, %s7
  %s10 = scalar_select 0, %s9, %s7
  $region1: #{model_forward.1} parent=0
    #allocation2 [shape = 'u8[2048]{0}', space=smem, size = 0x800, scoped, tag = 'input window, operand 3, single buffered']
    #allocation3 [shape = 's32[1]{0}', space=sflag, size = 0x4, scoped, tag = 'scoped memory for model_forward.1']
    #allocation4 [shape = 'u8[512]{0}', space=smem, size = 0x200, scoped, tag = 'input window, operand 4, single buffered']
    #allocation5 [shape = 's32[1]{0}', space=sflag, size = 0x4, scoped, tag = 'scoped memory for model_forward.1']
    #allocation6 [shape = 'u8[512]{0}', space=smem, size = 0x200, scoped, tag = 'input window, operand 5, single buffered']
    %11 = vsyncpa [#allocation3], 0
    %12 = vsyncpa [#allocation5], 0
    // Predicated region
    $region2: #{model_forward.1} parent=1 // pred_check
      _
    $region3: #{model_forward.1} parent=1 // pred_check_branch
      %14 = sbr.rel (0) target = $region5
    $region4: #{model_forward.1} parent=1 // pred_region
      _
    $region5: #{model_forward.1} parent=1 // pred_fallthru
      _
    // Predicated region
    $region6: #{model_forward.1} parent=1 // pred_check
      _
    $region7: #{model_forward.1} parent=1 // pred_check_branch
      %16 = sbr.rel (0) target = $region9
    $region8: #{model_forward.1} parent=1 // pred_region
      _
    $region9: #{model_forward.1} parent=1 // pred_fallthru
      _
    // Predicated region
    $region10: #{model_forward.1} parent=1 // pred_check
      _
    $region11: #{model_forward.1} parent=1 // pred_check_branch
      %18 = sbr.rel (0) target = $region13
    $region12: #{model_forward.1} parent=1 // pred_region
      _
    $region13: #{model_forward.1} parent=1 // pred_fallthru
      _
    // Predicated region
    $region14: #{model_forward.1} parent=1 // pred_check
      _
    $region15: #{model_forward.1} parent=1 // pred_check_branch
      %20 = sbr.rel (0) target = $region17
    $region16: #{model_forward.1} parent=1 // pred_region
      %s22 = ssub.s32 64, 64
      %23 = vsyncadd [#allocation3], %s22
      %s25 = sshll.u32 %s3, 4
      %s26 = int_to_ptr.vmem [resolvable:$true] %s25
      %28 = dma.vmem_to_smem %s26, 64, [#allocation2], [#allocation3]
    $region17: #{model_forward.1} parent=1 // pred_fallthru
      _
    // Predicated region
    $region18: #{model_forward.1} parent=1 // pred_check
      _
    $region19: #{model_forward.1} parent=1 // pred_check_branch
      %30 = sbr.rel (0) target = $region21
    $region20: #{model_forward.1} parent=1 // pred_region
      %s32 = ssub.s32 16, 16
      %33 = vsyncadd [#allocation5], %s32
      %s35 = sshll.u32 %s4, 4
      %s36 = int_to_ptr.vmem [resolvable:$true] %s35
      %38 = dma.vmem_to_smem %s36, 16, [#allocation4], [#allocation5]
    $region21: #{model_forward.1} parent=1 // pred_fallthru
      _
    // Predicated region
    $region22: #{model_forward.1} parent=1 // pred_check
      _
    $region23: #{model_forward.1} parent=1 // pred_check_branch
      %40 = sbr.rel (0) target = $region25
    $region24: #{model_forward.1} parent=1 // pred_region
      %s42 = ssub.s32 16, 16
      %43 = vsyncadd [#allocation5], %s42
      %s45 = sshll.u32 %s5, 4
      %s46 = int_to_ptr.vmem [resolvable:$true] %s45
      %48 = dma.vmem_to_smem %s46, 16, [#allocation6], [#allocation5]
    $region25: #{model_forward.1} parent=1 // pred_fallthru
      _
    // Predicated region
    $region26: #{model_forward.1} parent=1 // pred_check
      _
    $region27: #{model_forward.1} parent=1 // pred_check_branch
      %50 = sbr.rel (0) target = $region29
    $region28: #{model_forward.1} parent=1 // pred_region
      %51 = dma.done [#allocation3], 64
    $region29: #{model_forward.1} parent=1 // pred_fallthru
      _
    // Predicated region
    $region30: #{model_forward.1} parent=1 // pred_check
      _
    $region31: #{model_forward.1} parent=1 // pred_check_branch
      %53 = sbr.rel (0) target = $region33
    $region32: #{model_forward.1} parent=1 // pred_region
      %54 = dma.done [#allocation5], 16
    $region33: #{model_forward.1} parent=1 // pred_fallthru
      _
    // Predicated region
    $region34: #{model_forward.1} parent=1 // pred_check
      _
    $region35: #{model_forward.1} parent=1 // pred_check_branch
      %56 = sbr.rel (0) target = $region37
    $region36: #{model_forward.1} parent=1 // pred_region
      %57 = dma.done [#allocation5], 16
    $region37: #{model_forward.1} parent=1 // pred_fallthru
      _
    %58 = sfence
    %v59 = vld [vmem:[%s0] sm:$0xff]
    %s60 = scalar_lea.vmem %s0, 8
    %v61 = vld [vmem:[%s60] sm:$0xff]
    %s62 = scalar_lea.vmem %s0, 16
    %v63 = vld [vmem:[%s62] sm:$0xff]
    %v64 = vld [vmem:[%s1] sm:$0xf]
    %v65 = vld [vmem:[%s2] sm:$0xf]
    %s66 = sld [smem:[#allocation2]]
    %v67 = vstv %s66
    %v68 = vmul.f32 %v67, %v59
    %s69 = sld [smem:[#allocation2 + $0x1]]
    %v70 = vstv %s69
    %v71 = vmul.f32 %v70, %v61
    %v72 = vadd.f32 %v68, %v71
    %s73 = sld [smem:[#allocation2 + $0x2]]
    %v74 = vstv %s73
    %v75 = vmul.f32 %v74, %v63
    %v76 = vadd.f32 %v72, %v75
    %s77 = sld [smem:[#allocation4]]
    %v78 = vstv %s77
    %v79 = vmul.f32 %v78, %v64
    %s80 = sld [smem:[#allocation6]]
    %v81 = vstv %s80
    %v82 = vmul.f32 %v81, %v65
    %v83 = vadd.f32 %v79, %v82
    %v85 = vlaneseq
    %v86 = vshrl.u32 %v85, 7
    %v87 = vsub.s32 0, %v86
    %v88 = vrot.slane %v83, %v87
    %v89 = vlaneseq
    %v90 = vshrl.u32 %v89, 7
    %v91 = vsub.s32 1, %v90
    %v92 = vrot.slane %v83, %v91
    %v93 = vlaneseq
    %v94 = vshrl.u32 %v93, 7
    %v95 = vsub.s32 2, %v94
    %v96 = vrot.slane %v83, %v95
    %v97 = vlaneseq
    %v98 = vshrl.u32 %v97, 7
    %v99 = vsub.s32 3, %v98
    %v100 = vrot.slane %v83, %v99
    %v101 = vcombine.low %v88, %v92
    %v102 = vcombine.low %v96, %v100
    %v104 = vunpack.c.l.s4 1983009808
    %v105 = vunpack.c.0.s8 %v104
    %v106 = vlaneseq
    %v107 = vshrl.u32 %v106, 7
    %v108 = vsub.s32 %v105, %v107
    %v109 = vrot.slane %v101, %v108
    %v111 = vunpack.c.l.s4 1983009808
    %v112 = vunpack.c.0.s8 %v111
    %v113 = vlaneseq
    %v114 = vshrl.u32 %v113, 7
    %v115 = vsub.s32 %v112, %v114
    %v116 = vrot.slane %v102, %v115
    %v117 = vcombine.low %v109, %v116
    %v119 = vadd.f32 %v76, %v117
    %v121 = vcombine.high %v119, %v119
    %v123 = vunpack.c.l.s4 1983009808
    %v124 = vunpack.c.0.s8 %v123
    %v125 = vlaneseq
    %v126 = vshrl.u32 %v125, 7
    %v127 = vsub.s32 %v124, %v126
    %v128 = vrot.slane %v119, %v127
    %v130 = vunpack.c.l.s4 1983009808
    %v131 = vunpack.c.0.s8 %v130
    %v132 = vlaneseq
    %v133 = vshrl.u32 %v132, 7
    %v134 = vsub.s32 %v131, %v133
    %v135 = vrot.slane %v121, %v134
    %v136 = vcombine.high %v128, %v128
    %v137 = vcombine.high %v135, %v135
    %142 = vrot.lane.b32.xlu0 %v128, 1
    %v143 = vpop.permute.xlu0 %142
    %144 = vrot.lane.b32.xlu0 %v136, 1
    %v145 = vpop.permute.xlu0 %144
    %146 = vrot.lane.b32.xlu0 %v135, 1
    %v147 = vpop.permute.xlu0 %146
    %148 = vrot.lane.b32.xlu0 %v137, 1
    %v149 = vpop.permute.xlu0 %148
    %v150 = vlaneseq
    %v151 = vand.u32 %v150, 127
    %vm152 = vcmp.lt.s32.totalorder %v151, 1
    %v153 = vsel %vm152, %v147, %v149
    %v154 = vsel %vm152, %v145, %v147
    %v155 = vsel %vm152, %v143, %v145
    %v156 = vsel %vm152, %v149, %v143
    %v161 = vcombine.low %v156, %v155
    %v162 = vcombine.low %v154, %v153
    %v164 = vunpack.c.l.s4 1983009808
    %v165 = vunpack.c.0.s8 %v164
    %v166 = vlaneseq
    %v167 = vshrl.u32 %v166, 7
    %v168 = vsub.s32 %v165, %v167
    %v169 = vrot.slane %v161, %v168
    %v171 = vunpack.c.l.s4 1983009808
    %v172 = vunpack.c.0.s8 %v171
    %v173 = vlaneseq
    %v174 = vshrl.u32 %v173, 7
    %v175 = vsub.s32 %v172, %v174
    %v176 = vrot.slane %v162, %v175
    %v177 = vcombine.low %v169, %v176
    %v179 = vadd.f32 %v119, %v177
    %180 = vrot.lane.b32.xlu0 %v128, 127
    %v181 = vpop.permute.xlu0 %180
    %182 = vrot.lane.b32.xlu0 %v136, 127
    %v183 = vpop.permute.xlu0 %182
    %184 = vrot.lane.b32.xlu0 %v135, 127
    %v185 = vpop.permute.xlu0 %184
    %186 = vrot.lane.b32.xlu0 %v137, 127
    %v187 = vpop.permute.xlu0 %186
    %vm188 = vcmp.lt.s32.totalorder %v151, 127
    %v189 = vsel %vm188, %v185, %v187
    %v190 = vsel %vm188, %v183, %v185
    %v191 = vsel %vm188, %v181, %v183
    %v192 = vsel %vm188, %v187, %v181
    %v197 = vcombine.low %v191, %v190
    %v198 = vcombine.low %v189, %v192
    %v200 = vunpack.c.l.s4 1983009808
    %v201 = vunpack.c.0.s8 %v200
    %v202 = vlaneseq
    %v203 = vshrl.u32 %v202, 7
    %v204 = vsub.s32 %v201, %v203
    %v205 = vrot.slane %v197, %v204
    %v207 = vunpack.c.l.s4 1983009808
    %v208 = vunpack.c.0.s8 %v207
    %v209 = vlaneseq
    %v210 = vshrl.u32 %v209, 7
    %v211 = vsub.s32 %v208, %v210
    %v212 = vrot.slane %v198, %v211
    %v213 = vcombine.low %v205, %v212
    %v215 = vadd.f32 %v179, %v213
    %v217 = vcombine.high %v215, %v215
    %v219 = vunpack.c.l.s4 1983009808
    %v220 = vunpack.c.0.s8 %v219
    %v221 = vlaneseq
    %v222 = vshrl.u32 %v221, 7
    %v223 = vsub.s32 %v220, %v222
    %v224 = vrot.slane %v215, %v223
    %v226 = vunpack.c.l.s4 1983009808
    %v227 = vunpack.c.0.s8 %v226
    %v228 = vlaneseq
    %v229 = vshrl.u32 %v228, 7
    %v230 = vsub.s32 %v227, %v229
    %v231 = vrot.slane %v217, %v230
    %v232 = vcombine.high %v224, %v224
    %v233 = vcombine.high %v231, %v231
    %238 = vrot.lane.b32.xlu0 %v224, 22
    %v239 = vpop.permute.xlu0 %238
    %240 = vrot.lane.b32.xlu0 %v232, 22
    %v241 = vpop.permute.xlu0 %240
    %242 = vrot.lane.b32.xlu0 %v231, 22
    %v243 = vpop.permute.xlu0 %242
    %244 = vrot.lane.b32.xlu0 %v233, 22
    %v245 = vpop.permute.xlu0 %244
    %vm246 = vcmp.lt.s32.totalorder %v151, 22
    %v247 = vsel %vm246, %v243, %v245
    %v248 = vsel %vm246, %v241, %v243
    %v249 = vsel %vm246, %v239, %v241
    %v250 = vsel %vm246, %v245, %v239
    %v255 = vcombine.low %v250, %v249
    %v256 = vcombine.low %v248, %v247
    %v258 = vunpack.c.l.s4 1983009808
    %v259 = vunpack.c.0.s8 %v258
    %v260 = vlaneseq
    %v261 = vshrl.u32 %v260, 7
    %v262 = vsub.s32 %v259, %v261
    %v263 = vrot.slane %v255, %v262
    %v265 = vunpack.c.l.s4 1983009808
    %v266 = vunpack.c.0.s8 %v265
    %v267 = vlaneseq
    %v268 = vshrl.u32 %v267, 7
    %v269 = vsub.s32 %v266, %v268
    %v270 = vrot.slane %v256, %v269
    %v271 = vcombine.low %v263, %v270
    %v273 = vadd.f32 %v215, %v271
    %274 = vrot.lane.b32.xlu0 %v224, 106
    %v275 = vpop.permute.xlu0 %274
    %276 = vrot.lane.b32.xlu0 %v232, 106
    %v277 = vpop.permute.xlu0 %276
    %278 = vrot.lane.b32.xlu0 %v231, 106
    %v279 = vpop.permute.xlu0 %278
    %280 = vrot.lane.b32.xlu0 %v233, 106
    %v281 = vpop.permute.xlu0 %280
    %vm282 = vcmp.lt.s32.totalorder %v151, 106
    %v283 = vsel %vm282, %v279, %v281
    %v284 = vsel %vm282, %v277, %v279
    %v285 = vsel %vm282, %v275, %v277
    %v286 = vsel %vm282, %v281, %v275
    %v291 = vcombine.low %v285, %v284
    %v292 = vcombine.low %v283, %v286
    %v294 = vunpack.c.l.s4 1983009808
    %v295 = vunpack.c.0.s8 %v294
    %v296 = vlaneseq
    %v297 = vshrl.u32 %v296, 7
    %v298 = vsub.s32 %v295, %v297
    %v299 = vrot.slane %v291, %v298
    %v301 = vunpack.c.l.s4 1983009808
    %v302 = vunpack.c.0.s8 %v301
    %v303 = vlaneseq
    %v304 = vshrl.u32 %v303, 7
    %v305 = vsub.s32 %v302, %v304
    %v306 = vrot.slane %v292, %v305
    %v307 = vcombine.low %v299, %v306
    %v309 = vadd.f32 %v273, %v307
    %v310 = vmul.f32 %v309, 0.11111111
    %v311 = vadd.f32 %v310, 3.0
    %v312 = vmax.f32 %v311, 0.0
    %v313 = vmin.f32 %v312, 6.0
    %v314 = vmul.f32 %v310, %v313
    %v315 = vmul.f32 %v314, 0.16666667
    %316 = vst [vmem:[%s6] sm:$0xff] %v315
    %s317 = sld [smem:[#allocation2 + $0x80]]
    %v318 = vstv %s317
    %v319 = vmul.f32 %v318, %v59
    %s320 = sld [smem:[#allocation2 + $0x81]]
    %v321 = vstv %s320
    %v322 = vmul.f32 %v321, %v61
    %v323 = vadd.f32 %v319, %v322
    %s324 = sld [smem:[#allocation2 + $0x82]]
    %v325 = vstv %s324
    %v326 = vmul.f32 %v325, %v63
    %v327 = vadd.f32 %v323, %v326
    %s328 = sld [smem:[#allocation4 + $0x1]]
    %v329 = vstv %s328
    %v330 = vmul.f32 %v329, %v64
    %s331 = sld [smem:[#allocation6 + $0x1]]
    %v332 = vstv %s331
    %v333 = vmul.f32 %v332, %v65
    %v334 = vadd.f32 %v330, %v333
    %v336 = vlaneseq
    %v337 = vshrl.u32 %v336, 7
    %v338 = vsub.s32 0, %v337
    %v339 = vrot.slane %v334, %v338
    %v340 = vlaneseq
    %v341 = vshrl.u32 %v340, 7
    %v342 = vsub.s32 1, %v341
    %v343 = vrot.slane %v334, %v342
    %v344 = vlaneseq
    %v345 = vshrl.u32 %v344, 7
    %v346 = vsub.s32 2, %v345
    %v347 = vrot.slane %v334, %v346
    %v348 = vlaneseq
    %v349 = vshrl.u32 %v348, 7
    %v350 = vsub.s32 3, %v349
    %v351 = vrot.slane %v334, %v350
    %v352 = vcombine.low %v339, %v343
    %v353 = vcombine.low %v347, %v351
    %v355 = vunpack.c.l.s4 1983009808
    %v356 = vunpack.c.0.s8 %v355
    %v357 = vlaneseq
    %v358 = vshrl.u32 %v357, 7
    %v359 = vsub.s32 %v356, %v358
    %v360 = vrot.slane %v352, %v359
    %v362 = vunpack.c.l.s4 1983009808
    %v363 = vunpack.c.0.s8 %v362
    %v364 = vlaneseq
    %v365 = vshrl.u32 %v364, 7
    %v366 = vsub.s32 %v363, %v365
    %v367 = vrot.slane %v353, %v366
    %v368 = vcombine.low %v360, %v367
    %v370 = vadd.f32 %v327, %v368
    %v372 = vcombine.high %v370, %v370
    %v374 = vunpack.c.l.s4 1983009808
    %v375 = vunpack.c.0.s8 %v374
    %v376 = vlaneseq
    %v377 = vshrl.u32 %v376, 7
    %v378 = vsub.s32 %v375, %v377
    %v379 = vrot.slane %v370, %v378
    %v381 = vunpack.c.l.s4 1983009808
    %v382 = vunpack.c.0.s8 %v381
    %v383 = vlaneseq
    %v384 = vshrl.u32 %v383, 7
    %v385 = vsub.s32 %v382, %v384
    %v386 = vrot.slane %v372, %v385
    %v387 = vcombine.high %v379, %v379
    %v388 = vcombine.high %v386, %v386
    %393 = vrot.lane.b32.xlu0 %v379, 1
    %v394 = vpop.permute.xlu0 %393
    %395 = vrot.lane.b32.xlu0 %v387, 1
    %v396 = vpop.permute.xlu0 %395
    %397 = vrot.lane.b32.xlu0 %v386, 1
    %v398 = vpop.permute.xlu0 %397
    %399 = vrot.lane.b32.xlu0 %v388, 1
    %v400 = vpop.permute.xlu0 %399
    %v401 = vsel %vm152, %v398, %v400
    %v402 = vsel %vm152, %v396, %v398
    %v403 = vsel %vm152, %v394, %v396
    %v404 = vsel %vm152, %v400, %v394
    %v409 = vcombine.low %v404, %v403
    %v410 = vcombine.low %v402, %v401
    %v412 = vunpack.c.l.s4 1983009808
    %v413 = vunpack.c.0.s8 %v412
    %v414 = vlaneseq
    %v415 = vshrl.u32 %v414, 7
    %v416 = vsub.s32 %v413, %v415
    %v417 = vrot.slane %v409, %v416
    %v419 = vunpack.c.l.s4 1983009808
    %v420 = vunpack.c.0.s8 %v419
    %v421 = vlaneseq
    %v422 = vshrl.u32 %v421, 7
    %v423 = vsub.s32 %v420, %v422
    %v424 = vrot.slane %v410, %v423
    %v425 = vcombine.low %v417, %v424
    %v427 = vadd.f32 %v370, %v425
    %428 = vrot.lane.b32.xlu0 %v379, 127
    %v429 = vpop.permute.xlu0 %428
    %430 = vrot.lane.b32.xlu0 %v387, 127
    %v431 = vpop.permute.xlu0 %430
    %432 = vrot.lane.b32.xlu0 %v386, 127
    %v433 = vpop.permute.xlu0 %432
    %434 = vrot.lane.b32.xlu0 %v388, 127
    %v435 = vpop.permute.xlu0 %434
    %v436 = vsel %vm188, %v433, %v435
    %v437 = vsel %vm188, %v431, %v433
    %v438 = vsel %vm188, %v429, %v431
    %v439 = vsel %vm188, %v435, %v429
    %v444 = vcombine.low %v438, %v437
    %v445 = vcombine.low %v436, %v439
    %v447 = vunpack.c.l.s4 1983009808
    %v448 = vunpack.c.0.s8 %v447
    %v449 = vlaneseq
    %v450 = vshrl.u32 %v449, 7
    %v451 = vsub.s32 %v448, %v450
    %v452 = vrot.slane %v444, %v451
    %v454 = vunpack.c.l.s4 1983009808
    %v455 = vunpack.c.0.s8 %v454
    %v456 = vlaneseq
    %v457 = vshrl.u32 %v456, 7
    %v458 = vsub.s32 %v455, %v457
    %v459 = vrot.slane %v445, %v458
    %v460 = vcombine.low %v452, %v459
    %v462 = vadd.f32 %v427, %v460
    %v464 = vcombine.high %v462, %v462
    %v466 = vunpack.c.l.s4 1983009808
    %v467 = vunpack.c.0.s8 %v466
    %v468 = vlaneseq
    %v469 = vshrl.u32 %v468, 7
    %v470 = vsub.s32 %v467, %v469
    %v471 = vrot.slane %v462, %v470
    %v473 = vunpack.c.l.s4 1983009808
    %v474 = vunpack.c.0.s8 %v473
    %v475 = vlaneseq
    %v476 = vshrl.u32 %v475, 7
    %v477 = vsub.s32 %v474, %v476
    %v478 = vrot.slane %v464, %v477
    %v479 = vcombine.high %v471, %v471
    %v480 = vcombine.high %v478, %v478
    %485 = vrot.lane.b32.xlu0 %v471, 22
    %v486 = vpop.permute.xlu0 %485
    %487 = vrot.lane.b32.xlu0 %v479, 22
    %v488 = vpop.permute.xlu0 %487
    %489 = vrot.lane.b32.xlu0 %v478, 22
    %v490 = vpop.permute.xlu0 %489
    %491 = vrot.lane.b32.xlu0 %v480, 22
    %v492 = vpop.permute.xlu0 %491
    %v493 = vsel %vm246, %v490, %v492
    %v494 = vsel %vm246, %v488, %v490
    %v495 = vsel %vm246, %v486, %v488
    %v496 = vsel %vm246, %v492, %v486
    %v501 = vcombine.low %v496, %v495
    %v502 = vcombine.low %v494, %v493
    %v504 = vunpack.c.l.s4 1983009808
    %v505 = vunpack.c.0.s8 %v504
    %v506 = vlaneseq
    %v507 = vshrl.u32 %v506, 7
    %v508 = vsub.s32 %v505, %v507
    %v509 = vrot.slane %v501, %v508
    %v511 = vunpack.c.l.s4 1983009808
    %v512 = vunpack.c.0.s8 %v511
    %v513 = vlaneseq
    %v514 = vshrl.u32 %v513, 7
    %v515 = vsub.s32 %v512, %v514
    %v516 = vrot.slane %v502, %v515
    %v517 = vcombine.low %v509, %v516
    %v519 = vadd.f32 %v462, %v517
    %520 = vrot.lane.b32.xlu0 %v471, 106
    %v521 = vpop.permute.xlu0 %520
    %522 = vrot.lane.b32.xlu0 %v479, 106
    %v523 = vpop.permute.xlu0 %522
    %524 = vrot.lane.b32.xlu0 %v478, 106
    %v525 = vpop.permute.xlu0 %524
    %526 = vrot.lane.b32.xlu0 %v480, 106
    %v527 = vpop.permute.xlu0 %526
    %v528 = vsel %vm282, %v525, %v527
    %v529 = vsel %vm282, %v523, %v525
    %v530 = vsel %vm282, %v521, %v523
    %v531 = vsel %vm282, %v527, %v521
    %v536 = vcombine.low %v530, %v529
    %v537 = vcombine.low %v528, %v531
    %v539 = vunpack.c.l.s4 1983009808
    %v540 = vunpack.c.0.s8 %v539
    %v541 = vlaneseq
    %v542 = vshrl.u32 %v541, 7
    %v543 = vsub.s32 %v540, %v542
    %v544 = vrot.slane %v536, %v543
    %v546 = vunpack.c.l.s4 1983009808
    %v547 = vunpack.c.0.s8 %v546
    %v548 = vlaneseq
    %v549 = vshrl.u32 %v548, 7
    %v550 = vsub.s32 %v547, %v549
    %v551 = vrot.slane %v537, %v550
    %v552 = vcombine.low %v544, %v551
    %v554 = vadd.f32 %v519, %v552
    %v555 = vmul.f32 %v554, 0.11111111
    %v556 = vadd.f32 %v555, 3.0
    %v557 = vmax.f32 %v556, 0.0
    %v558 = vmin.f32 %v557, 6.0
    %v559 = vmul.f32 %v555, %v558
    %v560 = vmul.f32 %v559, 0.16666667
    %s561 = scalar_lea.vmem %s6, 8
    %562 = vst [vmem:[%s561] sm:$0xff] %v560
    %s563 = sld [smem:[#allocation2 + $0x100]]
    %v564 = vstv %s563
    %v565 = vmul.f32 %v564, %v59
    %s566 = sld [smem:[#allocation2 + $0x101]]
    %v567 = vstv %s566
    %v568 = vmul.f32 %v567, %v61
    %v569 = vadd.f32 %v565, %v568
    %s570 = sld [smem:[#allocation2 + $0x102]]
    %v571 = vstv %s570
    %v572 = vmul.f32 %v571, %v63
    %v573 = vadd.f32 %v569, %v572
    %s574 = sld [smem:[#allocation4 + $0x2]]
    %v575 = vstv %s574
    %v576 = vmul.f32 %v575, %v64
    %s577 = sld [smem:[#allocation6 + $0x2]]
    %v578 = vstv %s577
    %v579 = vmul.f32 %v578, %v65
    %v580 = vadd.f32 %v576, %v579
    %v582 = vlaneseq
    %v583 = vshrl.u32 %v582, 7
    %v584 = vsub.s32 0, %v583
    %v585 = vrot.slane %v580, %v584
    %v586 = vlaneseq
    %v587 = vshrl.u32 %v586, 7
    %v588 = vsub.s32 1, %v587
    %v589 = vrot.slane %v580, %v588
    %v590 = vlaneseq
    %v591 = vshrl.u32 %v590, 7
    %v592 = vsub.s32 2, %v591
    %v593 = vrot.slane %v580, %v592
    %v594 = vlaneseq
    %v595 = vshrl.u32 %v594, 7
    %v596 = vsub.s32 3, %v595
    %v597 = vrot.slane %v580, %v596
    %v598 = vcombine.low %v585, %v589
    %v599 = vcombine.low %v593, %v597
    %v601 = vunpack.c.l.s4 1983009808
    %v602 = vunpack.c.0.s8 %v601
    %v603 = vlaneseq
    %v604 = vshrl.u32 %v603, 7
    %v605 = vsub.s32 %v602, %v604
    %v606 = vrot.slane %v598, %v605
    %v608 = vunpack.c.l.s4 1983009808
    %v609 = vunpack.c.0.s8 %v608
    %v610 = vlaneseq
    %v611 = vshrl.u32 %v610, 7
    %v612 = vsub.s32 %v609, %v611
    %v613 = vrot.slane %v599, %v612
    %v614 = vcombine.low %v606, %v613
    %v616 = vadd.f32 %v573, %v614
    %v618 = vcombine.high %v616, %v616
    %v620 = vunpack.c.l.s4 1983009808
    %v621 = vunpack.c.0.s8 %v620
    %v622 = vlaneseq
    %v623 = vshrl.u32 %v622, 7
    %v624 = vsub.s32 %v621, %v623
    %v625 = vrot.slane %v616, %v624
    %v627 = vunpack.c.l.s4 1983009808
    %v628 = vunpack.c.0.s8 %v627
    %v629 = vlaneseq
    %v630 = vshrl.u32 %v629, 7
    %v631 = vsub.s32 %v628, %v630
    %v632 = vrot.slane %v618, %v631
    %v633 = vcombine.high %v625, %v625
    %v634 = vcombine.high %v632, %v632
    %639 = vrot.lane.b32.xlu0 %v625, 1
    %v640 = vpop.permute.xlu0 %639
    %641 = vrot.lane.b32.xlu0 %v633, 1
    %v642 = vpop.permute.xlu0 %641
    %643 = vrot.lane.b32.xlu0 %v632, 1
    %v644 = vpop.permute.xlu0 %643
    %645 = vrot.lane.b32.xlu0 %v634, 1
    %v646 = vpop.permute.xlu0 %645
    %v647 = vsel %vm152, %v644, %v646
    %v648 = vsel %vm152, %v642, %v644
    %v649 = vsel %vm152, %v640, %v642
    %v650 = vsel %vm152, %v646, %v640
    %v655 = vcombine.low %v650, %v649
    %v656 = vcombine.low %v648, %v647
    %v658 = vunpack.c.l.s4 1983009808
    %v659 = vunpack.c.0.s8 %v658
    %v660 = vlaneseq
    %v661 = vshrl.u32 %v660, 7
    %v662 = vsub.s32 %v659, %v661
    %v663 = vrot.slane %v655, %v662
    %v665 = vunpack.c.l.s4 1983009808
    %v666 = vunpack.c.0.s8 %v665
    %v667 = vlaneseq
    %v668 = vshrl.u32 %v667, 7
    %v669 = vsub.s32 %v666, %v668
    %v670 = vrot.slane %v656, %v669
    %v671 = vcombine.low %v663, %v670
    %v673 = vadd.f32 %v616, %v671
    %674 = vrot.lane.b32.xlu0 %v625, 127
    %v675 = vpop.permute.xlu0 %674
    %676 = vrot.lane.b32.xlu0 %v633, 127
    %v677 = vpop.permute.xlu0 %676
    %678 = vrot.lane.b32.xlu0 %v632, 127
    %v679 = vpop.permute.xlu0 %678
    %680 = vrot.lane.b32.xlu0 %v634, 127
    %v681 = vpop.permute.xlu0 %680
    %v682 = vsel %vm188, %v679, %v681
    %v683 = vsel %vm188, %v677, %v679
    %v684 = vsel %vm188, %v675, %v677
    %v685 = vsel %vm188, %v681, %v675
    %v690 = vcombine.low %v684, %v683
    %v691 = vcombine.low %v682, %v685
    %v693 = vunpack.c.l.s4 1983009808
    %v694 = vunpack.c.0.s8 %v693
    %v695 = vlaneseq
    %v696 = vshrl.u32 %v695, 7
    %v697 = vsub.s32 %v694, %v696
    %v698 = vrot.slane %v690, %v697
    %v700 = vunpack.c.l.s4 1983009808
    %v701 = vunpack.c.0.s8 %v700
    %v702 = vlaneseq
    %v703 = vshrl.u32 %v702, 7
    %v704 = vsub.s32 %v701, %v703
    %v705 = vrot.slane %v691, %v704
    %v706 = vcombine.low %v698, %v705
    %v708 = vadd.f32 %v673, %v706
    %v710 = vcombine.high %v708, %v708
    %v712 = vunpack.c.l.s4 1983009808
    %v713 = vunpack.c.0.s8 %v712
    %v714 = vlaneseq
    %v715 = vshrl.u32 %v714, 7
    %v716 = vsub.s32 %v713, %v715
    %v717 = vrot.slane %v708, %v716
    %v719 = vunpack.c.l.s4 1983009808
    %v720 = vunpack.c.0.s8 %v719
    %v721 = vlaneseq
    %v722 = vshrl.u32 %v721, 7
    %v723 = vsub.s32 %v720, %v722
    %v724 = vrot.slane %v710, %v723
    %v725 = vcombine.high %v717, %v717
    %v726 = vcombine.high %v724, %v724
    %731 = vrot.lane.b32.xlu0 %v717, 22
    %v732 = vpop.permute.xlu0 %731
    %733 = vrot.lane.b32.xlu0 %v725, 22
    %v734 = vpop.permute.xlu0 %733
    %735 = vrot.lane.b32.xlu0 %v724, 22
    %v736 = vpop.permute.xlu0 %735
    %737 = vrot.lane.b32.xlu0 %v726, 22
    %v738 = vpop.permute.xlu0 %737
    %v739 = vsel %vm246, %v736, %v738
    %v740 = vsel %vm246, %v734, %v736
    %v741 = vsel %vm246, %v732, %v734
    %v742 = vsel %vm246, %v738, %v732
    %v747 = vcombine.low %v742, %v741
    %v748 = vcombine.low %v740, %v739
    %v750 = vunpack.c.l.s4 1983009808
    %v751 = vunpack.c.0.s8 %v750
    %v752 = vlaneseq
    %v753 = vshrl.u32 %v752, 7
    %v754 = vsub.s32 %v751, %v753
    %v755 = vrot.slane %v747, %v754
    %v757 = vunpack.c.l.s4 1983009808
    %v758 = vunpack.c.0.s8 %v757
    %v759 = vlaneseq
    %v760 = vshrl.u32 %v759, 7
    %v761 = vsub.s32 %v758, %v760
    %v762 = vrot.slane %v748, %v761
    %v763 = vcombine.low %v755, %v762
    %v765 = vadd.f32 %v708, %v763
    %766 = vrot.lane.b32.xlu0 %v717, 106
    %v767 = vpop.permute.xlu0 %766
    %768 = vrot.lane.b32.xlu0 %v725, 106
    %v769 = vpop.permute.xlu0 %768
    %770 = vrot.lane.b32.xlu0 %v724, 106
    %v771 = vpop.permute.xlu0 %770
    %772 = vrot.lane.b32.xlu0 %v726, 106
    %v773 = vpop.permute.xlu0 %772
    %v774 = vsel %vm282, %v771, %v773
    %v775 = vsel %vm282, %v769, %v771
    %v776 = vsel %vm282, %v767, %v769
    %v777 = vsel %vm282, %v773, %v767
    %v782 = vcombine.low %v776, %v775
    %v783 = vcombine.low %v774, %v777
    %v785 = vunpack.c.l.s4 1983009808
    %v786 = vunpack.c.0.s8 %v785
    %v787 = vlaneseq
    %v788 = vshrl.u32 %v787, 7
    %v789 = vsub.s32 %v786, %v788
    %v790 = vrot.slane %v782, %v789
    %v792 = vunpack.c.l.s4 1983009808
    %v793 = vunpack.c.0.s8 %v792
    %v794 = vlaneseq
    %v795 = vshrl.u32 %v794, 7
    %v796 = vsub.s32 %v793, %v795
    %v797 = vrot.slane %v783, %v796
    %v798 = vcombine.low %v790, %v797
    %v800 = vadd.f32 %v765, %v798
    %v801 = vmul.f32 %v800, 0.11111111
    %v802 = vadd.f32 %v801, 3.0
    %v803 = vmax.f32 %v802, 0.0
    %v804 = vmin.f32 %v803, 6.0
    %v805 = vmul.f32 %v801, %v804
    %v806 = vmul.f32 %v805, 0.16666667
    %s807 = scalar_lea.vmem %s6, 16
    %808 = vst [vmem:[%s807] sm:$0xff] %v806
    // Predicated region
    $region38: #{model_forward.1} parent=1 // pred_check
      _
    $region39: #{model_forward.1} parent=1 // pred_check_branch
      %810 = sbr.rel (0) target = $region41
    $region40: #{model_forward.1} parent=1 // pred_region
      _
    $region41: #{model_forward.1} parent=1 // pred_fallthru
      _
    // Predicated region
    $region42: #{model_forward.1} parent=1 // pred_check
      _
    $region43: #{model_forward.1} parent=1 // pred_check_branch
      %812 = sbr.rel (0) target = $region45
    $region44: #{model_forward.1} parent=1 // pred_region
      _
    $region45: #{model_forward.1} parent=1 // pred_fallthru
      _
    %813 = vsyncpa [#allocation3], 1
    %814 = vsyncpa [#allocation5], 1

</llo_original>
